<compile_context>
chip_gen: v7x
topology: tpu7x:2x2x1
jax: 0.10.0
libtpu: 0.0.40
codegen_flags: <defaults>
</compile_context>

<pallas_src>
import math

import numpy as np

import jax
import jax.numpy as jnp
from jax.experimental import pallas as pl
from jax.experimental.pallas import tpu as pltpu

INPUT_SIZE = 24 * 11  # 264
H1, H2, H3, OUT = 512, 128, 64, 1

# Batch-tiling policy for the HBM-streaming kernel.
MAX_BATCH_TILE = 8192          # 8192 x 264 x 4B = 8.65 MiB per buffer
MIN_SPLIT_BATCH = 1024         # below this: single full-array grid step
VMEM_LIMIT_BYTES = 32 * 1024 * 1024


def _cdiv(a, b):
    return -(-a // b)


def _round_up(a, m):
    return _cdiv(a, m) * m


def _pick_batch_tile(B):
    """Rows of x per grid step."""
    if B <= MIN_SPLIT_BATCH:
        # Single grid step; block == full array (always a legal block shape).
        return B
    # >=2 grid steps so the "parallel" axis can be split across TensorCores
    # (v7x megacore) and DMA/compute of consecutive tiles overlap; cap the
    # tile so double-buffered x stays well inside VMEM on every generation.
    num_tiles = max(2, _cdiv(B, MAX_BATCH_TILE))
    return min(MAX_BATCH_TILE, _round_up(_cdiv(B, num_tiles), 8))


def _collapsed_matvec_kernel(x_ref, w_ref, b_ref, o_ref):
    # x_ref: (tb, 264)  VMEM  streamed batch tile
    # w_ref: (1, 264)   VMEM  collapsed weights (resident across the grid)
    # b_ref: (1, 1)     SMEM  collapsed scalar bias
    # o_ref: (1, 1, tb) VMEM  lane-dense output row for this tile
    x = x_ref[...]                                    # (tb, 264)
    w = w_ref[...]                                    # (1, 264) broadcast over rows
    acc = jnp.sum(x * w, axis=-1)                     # (tb,)  VPU mul + XLU lane-reduce
    row = acc + b_ref[0, 0]                           # (tb,)
    o_ref[...] = row[None, None, :].astype(o_ref.dtype)   # lane-dense store


def collapse_params(params):
    """Fold the activation-free 4-layer MLP into one (1, 264) matvec + scalar bias.

    Done once per weight set, on host, in float64 to minimize rounding error
    of the collapse, then cast down to f32. Call this outside the jitted
    forward and reuse the result."""
    ws = [np.asarray(w, dtype=np.float64) for (w, _) in params]
    bs = [np.asarray(b, dtype=np.float64) for (_, b) in params]
    w_eff = ((ws[0] @ ws[1]) @ ws[2]) @ ws[3]                              # (264, 1)
    b_eff = ((bs[0] @ ws[1] + bs[1]) @ ws[2] + bs[2]) @ ws[3] + bs[3]      # (1, 1)
    return (jnp.asarray(w_eff.reshape(1, INPUT_SIZE), dtype=jnp.float32),
            jnp.asarray(b_eff.reshape(1, 1), dtype=jnp.float32))


@jax.jit
def your_model_forward(x, w_eff, b_eff):
    """x: (B, 24, 11) float32; (w_eff, b_eff) = collapse_params(params).
    Returns (B, 1) float32, matching the 4-layer MLP up to f32 rounding."""
    B = x.shape[0]
    x2d = x.reshape(B, INPUT_SIZE)          # matches torch.reshape(x, (B, 24*11))

    tb = _pick_batch_tile(B)
    num_tiles = _cdiv(B, tb)

    out_tiles = pl.pallas_call(
        _collapsed_matvec_kernel,
        out_shape=jax.ShapeDtypeStruct((num_tiles, 1, tb), jnp.float32),
        grid=(num_tiles,),
        in_specs=[
            pl.BlockSpec((tb, INPUT_SIZE), lambda i: (i, 0)),      # streamed x tiles
            pl.BlockSpec((1, INPUT_SIZE), lambda i: (0, 0)),       # resident W_eff
            pl.BlockSpec(memory_space=pltpu.MemorySpace.SMEM),     # scalar b_eff
        ],
        out_specs=pl.BlockSpec((1, 1, tb), lambda i: (i, 0, 0)),   # lane-dense output
        compiler_params=pltpu.CompilerParams(
            dimension_semantics=("parallel",),
            vmem_limit_bytes=VMEM_LIMIT_BYTES,
        ),
        cost_estimate=pl.CostEstimate(
            flops=2 * B * INPUT_SIZE,
            bytes_accessed=B * INPUT_SIZE * 4 + B * 4 + INPUT_SIZE * 4 + 4,
            transcendentals=0,
        ),
    )(x2d, w_eff, b_eff)

    # Drop rows of the (possibly partial) padded last tile. Rows are
    # independent, so padded garbage rows never pollute real outputs.
    return out_tiles.reshape(num_tiles * tb)[:B].reshape(B, OUT)


def init_params(key):
    """Deterministic init mimicking nn.Linear default (uniform +/- 1/sqrt(fan_in)).
    Weights stored as (in_features, out_features); biases stored as (1, out)."""
    dims = [(INPUT_SIZE, H1), (H1, H2), (H2, H3), (H3, OUT)]
    params = []
    for (fan_in, fan_out) in dims:
        key, kw, kb = jax.random.split(key, 3)
        bound = 1.0 / math.sqrt(fan_in)
        w = jax.random.uniform(kw, (fan_in, fan_out), jnp.float32,
                               minval=-bound, maxval=bound)
        b = jax.random.uniform(kb, (1, fan_out), jnp.float32,
                               minval=-bound, maxval=bound)
        params.append((w, b))
    return params


def reference_forward(x, params):
    """Un-collapsed sequential 4-layer reference in plain JAX (f32)."""
    B = x.shape[0]
    h = x.reshape(B, INPUT_SIZE)
    for (w, b) in params:
        h = h @ w + b
    return h


if __name__ == "__main__":
    key = jax.random.PRNGKey(0)
    key, kx_small, kx_big = jax.random.split(key, 3)
    params = init_params(key)

    # Collapse once per weight set (outside the jitted forward).
    w_eff, b_eff = collapse_params(params)

    # Small-shape check (single grid step, block == full array).
    B_small = 2
    x_small = jax.random.normal(kx_small, (B_small, 24, 11), dtype=jnp.float32)
    out_small = jax.block_until_ready(your_model_forward(x_small, w_eff, b_eff))
    ref_small = reference_forward(x_small, params)
    assert out_small.shape == (B_small, 1), out_small.shape
    assert jnp.allclose(out_small, ref_small, atol=1e-4, rtol=1e-4), (out_small, ref_small)

    # Larger batch: 2 parallel grid steps with a partial (padded) last tile.
    B_big = 3000
    x_big = jax.random.normal(kx_big, (B_big, 24, 11), dtype=jnp.float32)
    out_big = jax.block_until_ready(your_model_forward(x_big, w_eff, b_eff))
    ref_big = reference_forward(x_big, params)
    assert out_big.shape == (B_big, 1), out_big.shape
    assert jnp.allclose(out_big, ref_big, atol=1e-4, rtol=1e-4)

    print("KERNEL_OK")
</pallas_src>

<mosaic_0001>
module attributes {stable_mosaic.version = 11 : i64} {
  func.func @_collapsed_matvec_kernel(%arg0: i32, %arg1: memref<2x264xf32, #tpu.memory_space<vmem>>, %arg2: memref<1x264xf32, #tpu.memory_space<vmem>>, %arg3: memref<1x1xf32, #tpu.memory_space<smem>>, %arg4: memref<1x1x2xf32, #tpu.memory_space<vmem>>) attributes {dimension_semantics = [#tpu.dimension_semantics<parallel>], iteration_bounds = array<i64: 1>, scalar_prefetch = 0 : i64, scratch_operands = 0 : i64, tpu.core_type = #tpu.core_type<tc>, window_params = [{transform_indices = @transform_0, window_bounds = array<i64: 2, 264>}, {pipeline_mode = #tpu.pipeline_mode<synchronous>, transform_indices = @transform_1, window_bounds = array<i64: 1, 264>}, {transform_indices = @transform_2, window_bounds = array<i64: 1, 1>}, {transform_indices = @transform_3, window_bounds = array<i64: 1, 1, 2>}]} {
    %c0 = arith.constant 0 : index
    %c0_0 = arith.constant 0 : index
    %0 = vector.load %arg1[%c0, %c0_0] : memref<2x264xf32, #tpu.memory_space<vmem>>, vector<2x264xf32>
    %c0_1 = arith.constant 0 : index
    %c0_2 = arith.constant 0 : index
    %1 = vector.load %arg2[%c0_1, %c0_2] : memref<1x264xf32, #tpu.memory_space<vmem>>, vector<1x264xf32>
    %2 = vector.broadcast %1 : vector<1x264xf32> to vector<2x264xf32>
    %3 = arith.mulf %0, %2 : vector<2x264xf32>
    %cst = arith.constant dense<0.000000e+00> : vector<2xf32>
    %4 = vector.multi_reduction <add>, %3, %cst [1] : vector<2x264xf32> to vector<2xf32>
    %c0_3 = arith.constant 0 : index
    %c0_4 = arith.constant 0 : index
    %5 = memref.load %arg3[%c0_3, %c0_4] : memref<1x1xf32, #tpu.memory_space<smem>>
    %6 = vector.broadcast %5 : f32 to vector<2xf32>
    %7 = arith.addf %4, %6 : vector<2xf32>
    %8 = vector.shape_cast %7 : vector<2xf32> to vector<1x1x2xf32>
    %c0_5 = arith.constant 0 : index
    %c0_6 = arith.constant 0 : index
    %c0_7 = arith.constant 0 : index
    %9 = vector.load %arg4[%c0_5, %c0_6, %c0_7] : memref<1x1x2xf32, #tpu.memory_space<vmem>>, vector<1x1x2xf32>
    tpu.vector_store %arg4[%c0_5, %c0_6, %c0_7], %8 {strides = array<i32>} : memref<1x1x2xf32, #tpu.memory_space<vmem>>, vector<1x1x2xf32>,
    return
  }
  func.func @transform_0(%arg0: i32) -> (i32, i32) {
    %c0_i32 = arith.constant 0 : i32
    %c0_i32_0 = arith.constant 0 : i32
    return %arg0, %c0_i32 : i32, i32
  }
  func.func @transform_1(%arg0: i32) -> (i32, i32) {
    %c0_i32 = arith.constant 0 : i32
    %c0_i32_0 = arith.constant 0 : i32
    %c0_i32_1 = arith.constant 0 : i32
    return %c0_i32, %c0_i32_0 : i32, i32
  }
  func.func @transform_2(%arg0: i32) -> (i32, i32) {
    %c0_i32 = arith.constant 0 : i32
    %c0_i32_0 = arith.constant 0 : i32
    %c0_i32_1 = arith.constant 0 : i32
    return %c0_i32, %c0_i32_0 : i32, i32
  }
  func.func @transform_3(%arg0: i32) -> (i32, i32, i32) {
    %c0_i32 = arith.constant 0 : i32
    %c0_i32_0 = arith.constant 0 : i32
    %c0_i32_1 = arith.constant 0 : i32
    return %arg0, %c0_i32, %c0_i32_0 : i32, i32, i32
  }
}

</mosaic_0001>

<llo_original>
// kernel: your_model_forward.1
$region0: #{your_model_forward.1}
  #allocation0 [shape = 'u32[]', space=smem, size = 0x4, offset = 0x4, fixed_abs, tag = 'smem constant byte address 0x4 - core index']
  #allocation1 [shape = 'u32[144,128]{1,0:T(1,128)}', space=vmem, size = 0x12000, scoped, tag = 'internal scratch']
  #allocation2 [shape = 'f32[1,1]{1,0:T(1,128)S(6)}', space=smem, size = 0x200, scoped, tag = 'scoped memory for your_model_forward.1']
  %s0 = inlined_call_operand.vmem [shape: f32[2,264], index: 0, kind: input, shape index: {}]
  %s1 = inlined_call_operand.vmem [shape: f32[1,264], index: 1, kind: input, shape index: {}]
  %s2 = inlined_call_operand.<no memory space> [shape: f32[1,1], index: 2, kind: input, shape index: {}]
  %s3 = inlined_call_operand.hbm [shape: f32[1,1,2], index: 3, kind: output, shape index: {}]
  %s4 = sld [smem:[#allocation0]]
  $region22: #{your_model_forward.1} parent=0
    _
  %s6 = ssub.s32 1, %s4
  %s7 = scalar_select 0, %s6, %s4
  %8 = sst [smem:[#allocation2]] %s2
  $region1: #{your_model_forward.1} parent=0
    #allocation3 [shape = 'u8[512]{0}', space=vmem, size = 0x400, scoped, tag = 'output window, operand 0, single buffered']
    #allocation4 [shape = 's32[1]{0}', space=sflag, size = 0x4, scoped, tag = 'scoped memory for your_model_forward.1']
    %9 = vsyncpa [#allocation4], 0
    // Predicated region
    $region2: #{your_model_forward.1} parent=1 // pred_check
      _
    $region3: #{your_model_forward.1} parent=1 // pred_check_branch
      %11 = sbr.rel (0) target = $region5
    $region4: #{your_model_forward.1} parent=1 // pred_region
      _
    $region5: #{your_model_forward.1} parent=1 // pred_fallthru
      _
    // Predicated region
    $region6: #{your_model_forward.1} parent=1 // pred_check
      _
    $region7: #{your_model_forward.1} parent=1 // pred_check_branch
      %13 = sbr.rel (0) target = $region9
    $region8: #{your_model_forward.1} parent=1 // pred_region
      _
    $region9: #{your_model_forward.1} parent=1 // pred_fallthru
      _
    // Predicated region
    $region10: #{your_model_forward.1} parent=1 // pred_check
      _
    $region11: #{your_model_forward.1} parent=1 // pred_check_branch
      %15 = sbr.rel (0) target = $region13
    $region12: #{your_model_forward.1} parent=1 // pred_region
      _
    $region13: #{your_model_forward.1} parent=1 // pred_fallthru
      _
    %v16 = vld [vmem:[%s0] sm:$0x3f]
    %v17 = vld [vmem:[%s1] sm:$0x7]
    %v19 = vlaneseq
    %v20 = vshrl.u32 %v19, 7
    %v21 = vsub.s32 0, %v20
    %v22 = vrot.slane %v17, %v21
    %v23 = vlaneseq
    %v24 = vshrl.u32 %v23, 7
    %v25 = vsub.s32 1, %v24
    %v26 = vrot.slane %v17, %v25
    %v27 = vlaneseq
    %v28 = vshrl.u32 %v27, 7
    %v29 = vsub.s32 2, %v28
    %v30 = vrot.slane %v17, %v29
    %v31 = vcombine.low %v22, %v26
    %v33 = vunpack.c.l.s4 1983009808
    %v34 = vunpack.c.0.s8 %v33
    %v35 = vlaneseq
    %v36 = vshrl.u32 %v35, 7
    %v37 = vsub.s32 %v34, %v36
    %v38 = vrot.slane %v31, %v37
    %v40 = vunpack.c.l.s4 1983009808
    %v41 = vunpack.c.0.s8 %v40
    %v42 = vlaneseq
    %v43 = vshrl.u32 %v42, 7
    %v44 = vsub.s32 %v41, %v43
    %v45 = vrot.slane %v30, %v44
    %v46 = vcombine.low %v38, %v45
    %v48 = vmul.f32 %v16, %v46
    %v50 = vcombine.high %v48, %v48
    %v52 = vunpack.c.l.s4 1983009808
    %v53 = vunpack.c.0.s8 %v52
    %v54 = vlaneseq
    %v55 = vshrl.u32 %v54, 7
    %v56 = vsub.s32 %v53, %v55
    %v57 = vrot.slane %v48, %v56
    %v59 = vunpack.c.l.s4 1983009808
    %v60 = vunpack.c.0.s8 %v59
    %v61 = vlaneseq
    %v62 = vshrl.u32 %v61, 7
    %v63 = vsub.s32 %v60, %v62
    %v64 = vrot.slane %v50, %v63
    %v65 = vcombine.high %v57, %v57
    %vm69 = vcmask 1041408
    %v70 = vsel %vm69, %v57, 0.0
    %v71 = vsel %vm69, %v65, 0.0
    %v72 = vadd.f32 %v70, %v71
    %vm73 = vcmask 58368
    %v74 = vsel %vm73, %v64, 0.0
    %v75 = vadd.f32 %v72, %v74
    %76 = vadd.xlane.f32.xlu0 %v75
    %v77 = vpop.xlane.xlu0 %76
    %s78 = sld [smem:[#allocation2]]
    %v79 = vstv %s78
    %v80 = vadd.f32 %v77, %v79
    %v82 = vlaneseq
    %v83 = vand.u32 %v82, 127
    %v84 = vlaneseq
    %v85 = vshrl.u32 %v84, 7
    %v86 = vsub.s32 %v83, %v85
    %v87 = vrot.slane %v80, %v86
    %vm89 = vcmask 8192
    %90 = vst.msk [vmem:[#allocation3] sm:$0x1] %vm89, %v87
    // Predicated region
    $region14: #{your_model_forward.1} parent=1 // pred_check
      _
    $region15: #{your_model_forward.1} parent=1 // pred_check_branch
      %92 = sbr.rel (0) target = $region17
    $region16: #{your_model_forward.1} parent=1 // pred_region
      %s94 = ssub.s32 16, 16
      %95 = vsyncadd [#allocation4], %s94
      %s97 = sshll.u32 [#allocation3], 4
      %s98 = int_to_ptr.vmem [resolvable:$true] %s97
      %100 = dma.vmem_to_hbm [thread:$0]  %s98, 16, %s3, [#allocation4]
    $region17: #{your_model_forward.1} parent=1 // pred_fallthru
      _
    // Predicated region
    $region18: #{your_model_forward.1} parent=1 // pred_check
      _
    $region19: #{your_model_forward.1} parent=1 // pred_check_branch
      %102 = sbr.rel (0) target = $region21
    $region20: #{your_model_forward.1} parent=1 // pred_region
      %103 = dma.done [#allocation4], 16
    $region21: #{your_model_forward.1} parent=1 // pred_fallthru
      _
    %104 = vsyncpa [#allocation4], 1

</llo_original>
